<compile_context>
chip_gen: v5e
topology: v5e:2x2
jax: 0.10.0
libtpu: 0.0.40
codegen_flags: <defaults>
</compile_context>

<pallas_src>
import jax
import jax.numpy as jnp
from jax.experimental import pallas as pl
from jax.experimental.pallas import tpu as pltpu


def _mbstd_concat_kernel(x_ref, o_ref):
    # x_ref: (N, C, T) input tile in VMEM; o_ref: (N, C+1, T) fused output tile.
    n, c, _ = x_ref.shape
    x = x_ref[...].astype(jnp.float32)

    inv_n = 1.0 / n
    s1 = jnp.sum(x, axis=0)                         # (C, T) sum over batch
    s2 = jnp.sum(x * x, axis=0)                     # (C, T) sum of squares over batch
    mu = s1 * inv_n
    var = jnp.maximum(s2 * inv_n - mu * mu, 0.0)    # biased variance; clamp fp cancellation
    std = jnp.sqrt(var + 1e-8)                      # (C, T)
    vals = jnp.mean(std, axis=0, keepdims=True)     # (1, T) mean over channels (VPU/XLU, no MXU)

    # Fused concat: pass x through, broadcast the std row across the batch dim.
    o_ref[:, :c, :] = x_ref[...].astype(o_ref.dtype)
    o_ref[:, c:, :] = jnp.broadcast_to(
        vals[None, :, :], (n, 1, vals.shape[-1])
    ).astype(o_ref.dtype)


def _pick_tile_hw(n, c, hw, dtype_bytes, vmem_budget_bytes=24 * 1024 * 1024):
    """Largest lane tile whose double-buffered in+out blocks fit the VMEM budget."""
    if hw % 128 != 0:
        # A full-extent block is always legal regardless of lane alignment.
        return hw
    # 2x (double buffer) * [input (N,C,T) + output (N,C+1,T)] bytes per lane.
    per_lane_bytes = 2 * (n * c + n * (c + 1)) * dtype_bytes
    tile = (vmem_budget_bytes // per_lane_bytes) // 128 * 128
    return int(max(128, min(hw, tile)))


def minibatch_std_concat(x):
    """averaging='all': (N, C, H, W) -> (N, C+1, H, W)."""
    n, c, h, w = x.shape
    hw = h * w
    x_flat = x.reshape(n, c, hw)

    # TODO(synk): for tiny inputs (< a few MiB) a pure-JAX fallback beats the fixed
    # pallas_call overhead; kept unconditionally on the Pallas path here so the
    # kernel itself is exercised.

    tile_hw = _pick_tile_hw(n, c, hw, x.dtype.itemsize)
    grid = (pl.cdiv(hw, tile_hw),)

    cost = pl.CostEstimate(
        flops=5 * n * c * hw + 2 * c * hw,
        transcendentals=c * hw,
        bytes_accessed=(n * c * hw + n * (c + 1) * hw) * x.dtype.itemsize,
    )

    out_flat = pl.pallas_call(
        _mbstd_concat_kernel,
        out_shape=jax.ShapeDtypeStruct((n, c + 1, hw), x.dtype),
        grid_spec=pltpu.PrefetchScalarGridSpec(
            num_scalar_prefetch=0,
            grid=grid,
            in_specs=[pl.BlockSpec((n, c, tile_hw), lambda i: (0, 0, i))],
            out_specs=pl.BlockSpec((n, c + 1, tile_hw), lambda i: (0, 0, i)),
        ),
        compiler_params=pltpu.CompilerParams(
            dimension_semantics=("parallel",),
        ),
        cost_estimate=cost,
    )(x_flat)

    return out_flat.reshape(n, c + 1, h, w)


def _reference(x):
    # Pure-JAX reference mirroring the PyTorch forward (averaging='all', two-pass).
    mu = jnp.mean(x, axis=0, keepdims=True)
    std = jnp.sqrt(jnp.mean((x - mu) ** 2, axis=0, keepdims=True) + 1e-8)  # (1,C,H,W)
    vals = jnp.mean(std, axis=1, keepdims=True)                            # (1,1,H,W)
    vals = jnp.broadcast_to(vals, (x.shape[0], 1, x.shape[2], x.shape[3]))
    return jnp.concatenate([x, vals], axis=1)


if __name__ == "__main__":
    key = jax.random.PRNGKey(0)
    N, C, H, W = 2, 4, 16, 16
    x = jax.random.normal(key, (N, C, H, W), dtype=jnp.float32)

    out = jax.block_until_ready(minibatch_std_concat(x))

    ref = _reference(x)
    assert out.shape == (N, C + 1, H, W), out.shape
    assert jnp.allclose(out, ref, atol=1e-5, rtol=1e-5), "mismatch vs reference"

    print("KERNEL_OK")
</pallas_src>

<mosaic_0001>
module attributes {stable_mosaic.version = 11 : i64} {
  func.func @_mbstd_concat_kernel(%arg0: i32, %arg1: memref<2x4x256xf32, #tpu.memory_space<vmem>>, %arg2: memref<2x5x256xf32, #tpu.memory_space<vmem>>) attributes {dimension_semantics = [#tpu.dimension_semantics<parallel>], iteration_bounds = array<i64: 1>, scalar_prefetch = 0 : i64, scratch_operands = 0 : i64, tpu.core_type = #tpu.core_type<tc>, window_params = [{transform_indices = @transform_0, window_bounds = array<i64: 2, 4, 256>}, {transform_indices = @transform_1, window_bounds = array<i64: 2, 5, 256>}]} {
    %c0 = arith.constant 0 : index
    %c0_0 = arith.constant 0 : index
    %c0_1 = arith.constant 0 : index
    %0 = vector.load %arg1[%c0, %c0_0, %c0_1] : memref<2x4x256xf32, #tpu.memory_space<vmem>>, vector<2x4x256xf32>
    %cst = arith.constant dense<0.000000e+00> : vector<4x256xf32>
    %1 = vector.multi_reduction <add>, %0, %cst [0] : vector<2x4x256xf32> to vector<4x256xf32>
    %2 = arith.mulf %0, %0 : vector<2x4x256xf32>
    %cst_2 = arith.constant dense<0.000000e+00> : vector<4x256xf32>
    %3 = vector.multi_reduction <add>, %2, %cst_2 [0] : vector<2x4x256xf32> to vector<4x256xf32>
    %cst_3 = arith.constant 5.000000e-01 : f32
    %4 = vector.broadcast %cst_3 : f32 to vector<4x256xf32>
    %5 = arith.mulf %1, %4 : vector<4x256xf32>
    %cst_4 = arith.constant 5.000000e-01 : f32
    %6 = vector.broadcast %cst_4 : f32 to vector<4x256xf32>
    %7 = arith.mulf %3, %6 : vector<4x256xf32>
    %8 = arith.mulf %5, %5 : vector<4x256xf32>
    %9 = arith.subf %7, %8 : vector<4x256xf32>
    %cst_5 = arith.constant 0.000000e+00 : f32
    %10 = vector.broadcast %cst_5 : f32 to vector<4x256xf32>
    %11 = arith.maximumf %9, %10 : vector<4x256xf32>
    %cst_6 = arith.constant 9.99999993E-9 : f32
    %12 = vector.broadcast %cst_6 : f32 to vector<4x256xf32>
    %13 = arith.addf %11, %12 : vector<4x256xf32>
    %14 = math.sqrt %13 : vector<4x256xf32>
    %cst_7 = arith.constant dense<0.000000e+00> : vector<256xf32>
    %15 = vector.multi_reduction <add>, %14, %cst_7 [0] : vector<4x256xf32> to vector<256xf32>
    %16 = vector.shape_cast %15 : vector<256xf32> to vector<1x256xf32>
    %cst_8 = arith.constant 4.000000e+00 : f32
    %17 = vector.broadcast %cst_8 : f32 to vector<1x256xf32>
    %18 = arith.divf %16, %17 : vector<1x256xf32>
    %c0_9 = arith.constant 0 : index
    %c0_10 = arith.constant 0 : index
    %c0_11 = arith.constant 0 : index
    %19 = vector.load %arg1[%c0_9, %c0_10, %c0_11] : memref<2x4x256xf32, #tpu.memory_space<vmem>>, vector<2x4x256xf32>
    %c0_12 = arith.constant 0 : index
    %c0_13 = arith.constant 0 : index
    %c0_14 = arith.constant 0 : index
    %20 = vector.load %arg2[%c0_12, %c0_13, %c0_14] : memref<2x5x256xf32, #tpu.memory_space<vmem>>, vector<2x4x256xf32>
    tpu.vector_store %arg2[%c0_12, %c0_13, %c0_14], %19 {strides = array<i32>} : memref<2x5x256xf32, #tpu.memory_space<vmem>>, vector<2x4x256xf32>,
    %21 = vector.shape_cast %18 : vector<1x256xf32> to vector<1x1x256xf32>
    %22 = vector.shape_cast %21 : vector<1x1x256xf32> to vector<1x1x256xf32>
    %23 = vector.broadcast %22 : vector<1x1x256xf32> to vector<2x1x256xf32>
    %c0_15 = arith.constant 0 : index
    %c4 = arith.constant 4 : index
    %c0_16 = arith.constant 0 : index
    %24 = vector.load %arg2[%c0_15, %c4, %c0_16] : memref<2x5x256xf32, #tpu.memory_space<vmem>>, vector<2x1x256xf32>
    tpu.vector_store %arg2[%c0_15, %c4, %c0_16], %23 {strides = array<i32>} : memref<2x5x256xf32, #tpu.memory_space<vmem>>, vector<2x1x256xf32>,
    return
  }
  func.func @transform_0(%arg0: i32) -> (i32, i32, i32) {
    %c0_i32 = arith.constant 0 : i32
    %c0_i32_0 = arith.constant 0 : i32
    %c0_i32_1 = arith.constant 0 : i32
    return %c0_i32, %c0_i32_0, %arg0 : i32, i32, i32
  }
  func.func @transform_1(%arg0: i32) -> (i32, i32, i32) {
    %c0_i32 = arith.constant 0 : i32
    %c0_i32_0 = arith.constant 0 : i32
    %c0_i32_1 = arith.constant 0 : i32
    return %c0_i32, %c0_i32_0, %arg0 : i32, i32, i32
  }
}

</mosaic_0001>

<llo_original>
// kernel: tpu_custom_call.1
$region0: #{tpu_custom_call.1}
  #allocation0 [shape = 'u32[]', space=smem, size = 0x4, offset = 0x4, fixed_abs, tag = 'smem constant byte address 0x4 - core index']
  #allocation1 [shape = 'u32[72,128]{1,0:T(1,128)}', space=vmem, size = 0x9000, scoped, tag = 'internal scratch']
  %s0 = inlined_call_operand.hbm [shape: f32[2,4,256], index: 0, kind: input, shape index: {}]
  %s1 = inlined_call_operand.vmem [shape: f32[2,5,256], index: 1, kind: output, shape index: {}]
  %s2 = sld [smem:[#allocation0]]
  $region18: #{tpu_custom_call.1} parent=0
    _
  %s4 = ssub.s32 1, %s2
  %s5 = scalar_select 0, %s4, %s2
  $region1: #{tpu_custom_call.1} parent=0
    #allocation2 [shape = 'u8[8192]{0}', space=vmem, size = 0x2000, scoped, tag = 'input window, operand 0, single buffered']
    #allocation3 [shape = 's32[1]{0}', space=sflag, size = 0x4, scoped, tag = 'scoped memory for tpu_custom_call.1']
    %6 = vsyncpa [#allocation3], 0
    // Predicated region
    $region2: #{tpu_custom_call.1} parent=1 // pred_check
      _
    $region3: #{tpu_custom_call.1} parent=1 // pred_check_branch
      %8 = sbr.rel (0) target = $region5
    $region4: #{tpu_custom_call.1} parent=1 // pred_region
      %10 = vsyncadd [#allocation3], 0
      %s11 = sshll.u32 %s0, 4
      %s12 = int_to_ptr.hbm [resolvable:$true] %s11
      %s13 = sshll.u32 [#allocation2], 4
      %s14 = int_to_ptr.vmem [resolvable:$true] %s13
      %19 = dma.hbm_to_vmem [thread:$0]  %s12, 256, %s14, [#allocation3], 128, 128, 8
    $region5: #{tpu_custom_call.1} parent=1 // pred_fallthru
      _
    // Predicated region
    $region6: #{tpu_custom_call.1} parent=1 // pred_check
      _
    $region7: #{tpu_custom_call.1} parent=1 // pred_check_branch
      %21 = sbr.rel (0) target = $region9
    $region8: #{tpu_custom_call.1} parent=1 // pred_region
      %23 = dma.done [#allocation3], 256
    $region9: #{tpu_custom_call.1} parent=1 // pred_fallthru
      _
    %v24 = vld [vmem:[#allocation2] sm:$0xff]
    %v25 = vld [vmem:[#allocation2 + $0x8] sm:$0xff]
    %28 = vst [vmem:[#allocation1] ss:$2 sm:$0xff] %v24
    %v29 = vld.sshfl [vmem:[#allocation1] sm:$0xff pattern:$0x75316420]
    %v30 = vld.sshfl [vmem:[#allocation1 + $0x8] sm:$0xff pattern:$0x75316420]
    %s31 = scalar_lea.vmem [#allocation1], 16
    %32 = vst [vmem:[%s31] ss:$2 sm:$0xff] %v25
    %v33 = vld.sshfl [vmem:[#allocation1 + $0x10] sm:$0xff pattern:$0x75316420]
    %v34 = vld.sshfl [vmem:[#allocation1 + $0x18] sm:$0xff pattern:$0x75316420]
    %vm39 = vcmask 1043456
    %v40 = vsel %vm39, %v29, 0.0
    %v41 = vsel %vm39, %v33, 0.0
    %v42 = vadd.f32 %v40, %v41
    %v43 = vsel %vm39, %v30, 0.0
    %v44 = vsel %vm39, %v34, 0.0
    %v45 = vadd.f32 %v43, %v44
    %v46 = vmul.f32 %v24, %v24
    %v47 = vmul.f32 %v25, %v25
    %50 = vst [vmem:[#allocation1] ss:$2 sm:$0xff] %v46
    %v51 = vld.sshfl [vmem:[#allocation1] sm:$0xff pattern:$0x75316420]
    %v52 = vld.sshfl [vmem:[#allocation1 + $0x8] sm:$0xff pattern:$0x75316420]
    %s53 = scalar_lea.vmem [#allocation1], 16
    %54 = vst [vmem:[%s53] ss:$2 sm:$0xff] %v47
    %v55 = vld.sshfl [vmem:[#allocation1 + $0x10] sm:$0xff pattern:$0x75316420]
    %v56 = vld.sshfl [vmem:[#allocation1 + $0x18] sm:$0xff pattern:$0x75316420]
    %v61 = vsel %vm39, %v51, 0.0
    %v62 = vsel %vm39, %v55, 0.0
    %v63 = vadd.f32 %v61, %v62
    %v64 = vsel %vm39, %v52, 0.0
    %v65 = vsel %vm39, %v56, 0.0
    %v66 = vadd.f32 %v64, %v65
    %v67 = vmul.f32 %v42, 0.5
    %v68 = vmul.f32 %v45, 0.5
    %v69 = vmul.f32 %v63, 0.5
    %v70 = vmul.f32 %v66, 0.5
    %v71 = vmul.f32 %v67, %v67
    %v72 = vmul.f32 %v68, %v68
    %v73 = vsub.f32 %v69, %v71
    %v74 = vsub.f32 %v70, %v72
    %v75 = vmax.f32 %v73, 0.0
    %v76 = vmax.f32 %v74, 0.0
    %v77 = vadd.f32 %v75, 1e-08
    %v78 = vadd.f32 %v76, 1e-08
    %v79 = vrsqrt.pop %v77
    %v80 = vmul.f32 %v79, %v77
    %v81 = vmul.f32 %v80, %v79
    %v82 = vmul.f32 0.5, %v81
    %v83 = vsub.f32 1.5, %v82
    %v84 = vmul.f32 %v79, %v83
    %v85 = vmul.f32 %v77, %v84
    %vm86 = vcmp.eq.f32.partialorder %v77, inf
    %v87 = vsel %vm86, %v77, %v85
    %vm88 = vcmp.eq.f32.partialorder %v77, 0.0
    %v89 = vand.u32 %v77, 2147483648
    %v90 = vsel %vm88, %v89, %v87
    %v91 = vrsqrt.pop %v78
    %v92 = vmul.f32 %v91, %v78
    %v93 = vmul.f32 %v92, %v91
    %v94 = vmul.f32 0.5, %v93
    %v95 = vsub.f32 1.5, %v94
    %v96 = vmul.f32 %v91, %v95
    %v97 = vmul.f32 %v78, %v96
    %vm98 = vcmp.eq.f32.partialorder %v78, inf
    %v99 = vsel %vm98, %v78, %v97
    %vm100 = vcmp.eq.f32.partialorder %v78, 0.0
    %v101 = vand.u32 %v78, 2147483648
    %v102 = vsel %vm100, %v101, %v99
    %v103 = vsel %vm39, %v90, 0.0
    %v104 = vrot.slane %v103, 4
    %v105 = vadd.f32 %v103, %v104
    %v106 = vrot.slane %v105, 2
    %v107 = vadd.f32 %v105, %v106
    %v108 = vrot.slane %v107, 1
    %v109 = vadd.f32 %v107, %v108
    %v110 = vsel %vm39, %v102, 0.0
    %v111 = vrot.slane %v110, 4
    %v112 = vadd.f32 %v110, %v111
    %v113 = vrot.slane %v112, 2
    %v114 = vadd.f32 %v112, %v113
    %v115 = vrot.slane %v114, 1
    %v116 = vadd.f32 %v114, %v115
    %v117 = vrcp.pop 4.0
    %v118 = vmul.f32 4.0, %v117
    %v119 = vsub.f32 1.0, %v118
    %v120 = vmul.f32 %v117, %v119
    %v121 = vadd.f32 %v117, %v120
    %vm122 = vweird.f32 %v117
    %v123 = vsel %vm122, %v117, %v121
    %v124 = vmul.f32 %v109, %v123
    %v125 = vmul.f32 %v116, %v123
    %126 = vst [vmem:[#allocation1] ss:$2 sm:$0xff] %v24
    %v127 = vld.sshfl [vmem:[#allocation1] sm:$0xff pattern:$0x75316420]
    %v128 = vld.sshfl [vmem:[#allocation1 + $0x8] sm:$0xff pattern:$0x75316420]
    %s129 = scalar_lea.vmem [#allocation1], 16
    %130 = vst [vmem:[%s129] ss:$2 sm:$0xff] %v25
    %v131 = vld.sshfl [vmem:[#allocation1 + $0x10] sm:$0xff pattern:$0x75316420]
    %v132 = vld.sshfl [vmem:[#allocation1 + $0x18] sm:$0xff pattern:$0x75316420]
    %137 = vst [vmem:[%s1] sm:$0xf] %v127
    %138 = vst [vmem:[%s1 + $0x8] sm:$0xf] %v128
    %139 = vst [vmem:[%s1 + $0x10] sm:$0xf] %v131
    %140 = vst [vmem:[%s1 + $0x18] sm:$0xf] %v132
    %v143 = vrot.slane %v125, 7
    %vm144 = vcmask 1040384
    %v145 = vsel %vm144, %v124, %v143
    %v147 = vlaneseq
    %vm148 = vcmp.ge.s32.totalorder %v147, 0
    %vm149 = vcmp.lt.s32.totalorder %v147, 256
    %vm150 = vmand %vm148, %vm149
    %s151 = scalar_lea.vmem %s1, 4
    %152 = vst.msk [vmem:[%s151] ss:$8 sm:$0x3] %vm150, %v145
    %153 = vst.msk [vmem:[%s151] ss:$8 sm:$0x0] %vm150, %v145
    %s154 = scalar_lea.vmem %s1, 20
    %155 = vst.msk [vmem:[%s154] ss:$8 sm:$0x3] %vm150, %v145
    %156 = vst.msk [vmem:[%s154] ss:$8 sm:$0x0] %vm150, %v145
    // Predicated region
    $region10: #{tpu_custom_call.1} parent=1 // pred_check
      _
    $region11: #{tpu_custom_call.1} parent=1 // pred_check_branch
      %158 = sbr.rel (0) target = $region13
    $region12: #{tpu_custom_call.1} parent=1 // pred_region
      _
    $region13: #{tpu_custom_call.1} parent=1 // pred_fallthru
      _
    // Predicated region
    $region14: #{tpu_custom_call.1} parent=1 // pred_check
      _
    $region15: #{tpu_custom_call.1} parent=1 // pred_check_branch
      %160 = sbr.rel (0) target = $region17
    $region16: #{tpu_custom_call.1} parent=1 // pred_region
      _
    $region17: #{tpu_custom_call.1} parent=1 // pred_fallthru
      _
    %161 = vsyncpa [#allocation3], 1

</llo_original>
